<compile_context>
chip_gen: v7x
topology: tpu7x:2x2x1
jax: 0.10.0
libtpu: 0.0.40
codegen_flags: <defaults>
</compile_context>

<pallas_src>
import math

import jax
import jax.numpy as jnp
from jax import lax
from jax.experimental import pallas as pl
from jax.experimental.pallas import tpu as pltpu


# --------------------------------------------------------------------------
# helpers
# --------------------------------------------------------------------------
def _round_up(x, m):
    return ((x + m - 1) // m) * m


def _row_tile(m, target):
    """Row (sublane) tile <= target (multiple of 8) and the padded row count."""
    if m >= target:
        return target, _round_up(m, target)
    t = _round_up(m, 8)
    return t, t


def _pick_tile(dim, target, granule=128):
    """Largest lane-dense tile <= target that divides `dim` (multiple of `granule`);
    `dim` itself when dim <= target; falls back to the full dim otherwise."""
    if dim <= target:
        return dim
    t = (target // granule) * granule
    while t >= granule:
        if dim % t == 0:
            return t
        t -= granule
    return dim


# --------------------------------------------------------------------------
# Tiled linear:  y = x @ W^T + b   (W kept in native nn.Linear (N, K) layout)
# --------------------------------------------------------------------------
def _linear_kernel(x_ref, w_ref, b_ref, o_ref, acc_ref):
    k_idx = pl.program_id(2)

    @pl.when(k_idx == 0)
    def _():
        acc_ref[...] = jnp.zeros_like(acc_ref)

    # x: (tm, tk), w: (tn, tk)  ->  contract over the shared K dim (x @ w^T).
    acc_ref[...] += lax.dot_general(
        x_ref[...], w_ref[...], (((1,), (1,)), ((), ())),
        preferred_element_type=jnp.float32)

    @pl.when(k_idx == pl.num_programs(2) - 1)
    def _():
        o_ref[...] = (acc_ref[...] + b_ref[...].astype(jnp.float32)).astype(o_ref.dtype)


def linear(x2, w, b, *, tm_target=512, tn_target=512, tk_target=512):
    """x2: [M, K]; w: [N, K] (nn.Linear layout); b: [N]  ->  [M, N]."""
    M, K = x2.shape
    N = w.shape[0]
    out_dtype = x2.dtype
    b2 = b.reshape(1, N)

    tm, Mp = _row_tile(M, tm_target)
    if Mp != M:
        x2 = jnp.pad(x2, ((0, Mp - M), (0, 0)))

    tn = _pick_tile(N, tn_target)          # lane dim: 128-multiple or full
    tk = _pick_tile(K, tk_target)

    grid = (Mp // tm, N // tn, K // tk)

    itemsize = jnp.dtype(x2.dtype).itemsize
    cost = pl.CostEstimate(
        flops=2 * Mp * K * N,
        transcendentals=0,
        bytes_accessed=(Mp * K + K * N + N + Mp * N) * itemsize)

    out = pl.pallas_call(
        _linear_kernel,
        out_shape=jax.ShapeDtypeStruct((Mp, N), out_dtype),
        grid_spec=pltpu.PrefetchScalarGridSpec(
            num_scalar_prefetch=0,
            grid=grid,
            in_specs=[
                pl.BlockSpec((tm, tk), lambda i, j, kk: (i, kk)),   # x rows
                pl.BlockSpec((tn, tk), lambda i, j, kk: (j, kk)),   # W tile, native (N,K)
                pl.BlockSpec((1, tn), lambda i, j, kk: (0, j)),     # bias tile
                # TODO(synk): sweep pipeline_mode=pl.Buffered(3) on the W spec if
                # the weight-tile DMA shows as exposed at large tk.
            ],
            out_specs=pl.BlockSpec((tm, tn), lambda i, j, kk: (i, j)),
            scratch_shapes=[pltpu.VMEM((tm, tn), jnp.float32)],
        ),
        compiler_params=pltpu.CompilerParams(
            dimension_semantics=("parallel", "parallel", "arbitrary")),
        cost_estimate=cost,
    )(x2, w, b2)

    if Mp != M:
        out = out[:M]
    return out


# --------------------------------------------------------------------------
# Flash-style attention: scores -> online softmax -> context, KV streamed
# --------------------------------------------------------------------------
def _make_flash_kernel(inv_scale, has_mask, kv_len, tkv, needs_kv_len_mask):
    mask_min = float(jnp.finfo(jnp.float32).min)

    def kernel(*refs):
        if has_mask:
            q_ref, k_ref, v_ref, m_ref, o_ref, m_sc, l_sc, acc_sc = refs
        else:
            q_ref, k_ref, v_ref, o_ref, m_sc, l_sc, acc_sc = refs
            m_ref = None

        kv_idx = pl.program_id(2)

        @pl.when(kv_idx == 0)
        def _():
            m_sc[...] = jnp.full_like(m_sc, -jnp.inf)
            l_sc[...] = jnp.zeros_like(l_sc)
            acc_sc[...] = jnp.zeros_like(acc_sc)

        # Fold 1/sqrt(d_k) into the small (tq, d_k) q tile instead of scaling scores.
        q = q_ref[...] * inv_scale
        s = lax.dot_general(q, k_ref[...], (((1,), (1,)), ((), ())),
                            preferred_element_type=jnp.float32)    # (tq, tkv) f32

        if has_mask:
            keep = m_ref[...].astype(jnp.int32) != 0
            s = jnp.where(keep, s, mask_min)
        if needs_kv_len_mask:
            col = kv_idx * tkv + lax.broadcasted_iota(jnp.int32, s.shape, 1)
            s = jnp.where(col < kv_len, s, mask_min)

        # online (flash) softmax, all stats in f32
        m_prev = m_sc[...]
        m_new = jnp.maximum(m_prev, jnp.max(s, axis=-1, keepdims=True))
        alpha = jnp.exp(m_prev - m_new)
        p = jnp.exp(s - m_new)
        l_sc[...] = alpha * l_sc[...] + jnp.sum(p, axis=-1, keepdims=True)
        acc_sc[...] = alpha * acc_sc[...] + jnp.dot(
            p.astype(v_ref.dtype), v_ref[...], preferred_element_type=jnp.float32)
        m_sc[...] = m_new

        @pl.when(kv_idx == pl.num_programs(2) - 1)
        def _():
            # approx=True would push the reciprocal to the EUP; kept exact here to
            # preserve the tight parity check against the reference.
            inv_l = pl.reciprocal(l_sc[...], approx=False)
            o_ref[...] = (acc_sc[...] * inv_l).astype(o_ref.dtype)

    return kernel


def attention(q, k, v, mask_bh, per_head_mask, heads, inv_scale, *,
              tq_target=256, tkv_target=512):
    """q: (BH, Sq, d_k); k,v: (BH, Skv, d_k); mask_bh: int8 (B or BH, Sq, Skv) or None.

    Returns (ctx, fused): ctx is (B, Sq, heads*d_k) when fused (d_k % 128 == 0),
    else (BH, Sq, d_k)."""
    BH, Sq, d_k = q.shape
    Skv = k.shape[1]
    B = BH // heads
    out_dtype = q.dtype

    tq, Sqp = _row_tile(Sq, tq_target)
    if Sqp != Sq:
        q = jnp.pad(q, ((0, 0), (0, Sqp - Sq), (0, 0)))

    if Skv <= tkv_target:
        tkv, Skvp = Skv, Skv
    else:
        tkv = tkv_target
        Skvp = _round_up(Skv, tkv)
    if Skvp != Skv:
        k = jnp.pad(k, ((0, 0), (0, Skvp - Skv), (0, 0)))
        v = jnp.pad(v, ((0, 0), (0, Skvp - Skv), (0, 0)))

    has_mask = mask_bh is not None
    if has_mask and (Sqp != Sq or Skvp != Skv):
        mask_bh = jnp.pad(mask_bh, ((0, 0), (0, Sqp - Sq), (0, Skvp - Skv)))
    # Padded KV columns are excluded via the zero-padded mask when a mask exists,
    # otherwise via an in-kernel iota column mask.
    needs_kv_len_mask = (Skvp != Skv) and not has_mask
    # TODO(synk): fully-masked rows give uniform weights over the *padded* KV
    # length when Skv is padded (degenerate case; matches finfo.min-fill semantics
    # otherwise).

    in_specs = [
        pl.BlockSpec((pl.Squeezed(), tq, d_k), lambda bh, qi, ki: (bh, qi, 0)),
        pl.BlockSpec((pl.Squeezed(), tkv, d_k), lambda bh, qi, ki: (bh, ki, 0)),
        pl.BlockSpec((pl.Squeezed(), tkv, d_k), lambda bh, qi, ki: (bh, ki, 0)),
    ]
    args = [q, k, v]
    if has_mask:
        if per_head_mask:
            m_map = lambda bh, qi, ki: (bh, qi, ki)
        else:
            m_map = lambda bh, qi, ki: (bh // heads, qi, ki)   # head-shared mask
        in_specs.append(pl.BlockSpec((pl.Squeezed(), tq, tkv), m_map))
        args.append(mask_bh)

    # Fuse the PyTorch transpose(1,2).flatten(2) recombine into the output layout
    # when the per-head slab is lane-dense.
    fused = (d_k % 128 == 0)
    if fused:
        out_shape = jax.ShapeDtypeStruct((B, Sqp, heads * d_k), out_dtype)
        out_spec = pl.BlockSpec((pl.Squeezed(), tq, d_k),
                                lambda bh, qi, ki: (bh // heads, qi, bh % heads))
    else:
        out_shape = jax.ShapeDtypeStruct((BH, Sqp, d_k), out_dtype)
        out_spec = pl.BlockSpec((pl.Squeezed(), tq, d_k),
                                lambda bh, qi, ki: (bh, qi, 0))

    kernel = _make_flash_kernel(inv_scale, has_mask, Skv, tkv, needs_kv_len_mask)

    out = pl.pallas_call(
        kernel,
        out_shape=out_shape,
        grid_spec=pltpu.PrefetchScalarGridSpec(
            num_scalar_prefetch=0,
            grid=(BH, Sqp // tq, Skvp // tkv),
            in_specs=in_specs,
            out_specs=out_spec,
            scratch_shapes=[pltpu.VMEM((tq, 1), jnp.float32),     # running max
                            pltpu.VMEM((tq, 1), jnp.float32),     # running denom
                            pltpu.VMEM((tq, d_k), jnp.float32)],  # running ctx acc
        ),
        compiler_params=pltpu.CompilerParams(
            dimension_semantics=("parallel", "parallel", "arbitrary")),
    )(*args)

    if Sqp != Sq:
        out = out[:, :Sq]
    return out, fused


# --------------------------------------------------------------------------
# Full MultiHeadAttention forward
# --------------------------------------------------------------------------
def _prepare_mask(mask, B, heads, Sq, Skv):
    """Return (int8 mask, per_head flag); head-shared masks stay (B, Sq, Skv)."""
    m = mask
    while m.ndim < 4:
        m = m[None]
    per_head = m.shape[1] != 1
    if per_head:
        m = jnp.broadcast_to(m, (B, heads, Sq, Skv)).reshape(B * heads, Sq, Skv)
    else:
        m = jnp.broadcast_to(m[:, 0], (B, Sq, Skv))
    return (m != 0).astype(jnp.int8), per_head


def multi_head_attention(query, key, value, params, heads, mask=None):
    wq, bq, wk, bk, wv, bv, wo, bo = params
    B, Sq, d_model = query.shape
    Skv = key.shape[1]
    assert d_model % heads == 0
    d_k = d_model // heads

    # projections (activations/weights may be bf16 -> bf16 MXU, f32 accumulation)
    q = linear(query.reshape(B * Sq, d_model), wq, bq)
    k = linear(key.reshape(B * Skv, d_model), wk, bk)
    v = linear(value.reshape(B * Skv, d_model), wv, bv)

    # PyTorch head "split": .view(B, heads, -1, d_k) is a plain reshape.
    q = q.reshape(B * heads, Sq, d_k)
    k = k.reshape(B * heads, Skv, d_k)
    v = v.reshape(B * heads, Skv, d_k)

    mask_bh, per_head = (None, False)
    if mask is not None:
        mask_bh, per_head = _prepare_mask(mask, B, heads, Sq, Skv)

    ctx, fused = attention(q, k, v, mask_bh, per_head, heads, 1.0 / math.sqrt(d_k))

    if fused:
        # already laid out as (B, Sq, heads*d_k) == transpose(1,2).flatten(2)
        ctx2 = ctx.reshape(B * Sq, d_model)
    else:
        ctx2 = ctx.reshape(B, heads, Sq, d_k).transpose(0, 2, 1, 3).reshape(B * Sq, d_model)

    out = linear(ctx2, wo, bo)
    return out.reshape(B, Sq, d_model)


# --------------------------------------------------------------------------
# Pure-JAX reference mirroring the PyTorch forward
# --------------------------------------------------------------------------
def mha_reference(query, key, value, params, heads, mask=None):
    wq, bq, wk, bk, wv, bv, wo, bo = params
    B, Sq, d_model = query.shape
    d_k = d_model // heads

    q = query @ wq.T + bq
    k = key @ wk.T + bk
    v = value @ wv.T + bv

    q = q.reshape(B, heads, -1, d_k)
    k = k.reshape(B, heads, -1, d_k)
    v = v.reshape(B, heads, -1, d_k)

    scores = jnp.einsum('bhqd,bhkd->bhqk', q, k) / math.sqrt(d_k)
    if mask is not None:
        scores = jnp.where(mask == 0, jnp.finfo(scores.dtype).min, scores)
    w = jax.nn.softmax(scores, axis=-1)
    ctx = jnp.einsum('bhqk,bhkd->bhqd', w, v)
    ctx = ctx.transpose(0, 2, 1, 3).reshape(B, -1, d_model)
    return ctx @ wo.T + bo


def _init_linear(key, out_features, in_features, dtype=jnp.float32):
    """Deterministic init mimicking nn.Linear (uniform(-1/sqrt(in), 1/sqrt(in)))."""
    kw, kb = jax.random.split(key)
    bound = 1.0 / math.sqrt(in_features)
    w = jax.random.uniform(kw, (out_features, in_features), dtype,
                           minval=-bound, maxval=bound)
    b = jax.random.uniform(kb, (out_features,), dtype,
                           minval=-bound, maxval=bound)
    return w, b


if __name__ == "__main__":
    def run_case(batch, seq, heads, d_model, *, with_mask, dtype=jnp.float32,
                 atol=1e-4, rtol=1e-4):
        keys = jax.random.split(jax.random.PRNGKey(0), 5)
        x = jax.random.normal(keys[0], (batch, seq, d_model), jnp.float32)
        params = ()
        for kk in keys[1:]:
            w, b = _init_linear(kk, d_model, d_model)
            params += (w, b)
        mask = None
        if with_mask:
            mask = jnp.tril(jnp.ones((seq, seq), jnp.int32))[None, None]  # [1,1,S,S]

        with jax.default_matmul_precision("highest"):
            y_ref = mha_reference(x, x, x, params, heads, mask=mask)

        xd = x.astype(dtype)
        pd = tuple(p.astype(dtype) for p in params)
        y = jax.block_until_ready(
            multi_head_attention(xd, xd, xd, pd, heads, mask=mask))
        ok = jnp.allclose(y.astype(jnp.float32), y_ref, atol=atol, rtol=rtol)
        assert ok, (f"mismatch: B={batch} S={seq} H={heads} D={d_model} "
                    f"mask={with_mask} dtype={dtype}")
        return y

    # small head dim (d_k=8): unfused recombine path, f32, with and without mask
    run_case(2, 8, 4, 32, with_mask=False)
    run_case(2, 8, 4, 32, with_mask=True)
    # d_k = 128: fused head-recombine output path, f32, with mask
    run_case(2, 8, 2, 256, with_mask=True)
    # bf16 MXU path (f32 accumulation / softmax), loose tolerance vs f32 reference
    run_case(2, 8, 4, 32, with_mask=False, dtype=jnp.bfloat16, atol=0.1, rtol=0.1)

    print("KERNEL_OK")
</pallas_src>

<mosaic_0001>
module attributes {stable_mosaic.version = 11 : i64} {
  func.func @_linear_kernel(%arg0: i32, %arg1: i32, %arg2: i32, %arg3: memref<16x32xf32, #tpu.memory_space<vmem>>, %arg4: memref<32x32xf32, #tpu.memory_space<vmem>>, %arg5: memref<1x32xf32, #tpu.memory_space<vmem>>, %arg6: memref<16x32xf32, #tpu.memory_space<vmem>>, %arg7: memref<16x32xf32, #tpu.memory_space<vmem>>) attributes {dimension_semantics = [#tpu.dimension_semantics<parallel>, #tpu.dimension_semantics<parallel>, #tpu.dimension_semantics<arbitrary>], iteration_bounds = array<i64: 1, 1, 1>, scalar_prefetch = 0 : i64, scratch_operands = 1 : i64, tpu.core_type = #tpu.core_type<tc>, window_params = [{transform_indices = @transform_0, window_bounds = array<i64: 16, 32>}, {transform_indices = @transform_1, window_bounds = array<i64: 32, 32>}, {transform_indices = @transform_2, window_bounds = array<i64: 1, 32>}, {transform_indices = @transform_3, window_bounds = array<i64: 16, 32>}]} {
    %c0_i32 = arith.constant 0 : i32
    %0 = arith.cmpi eq, %arg2, %c0_i32 : i32
    %1 = arith.extui %0 : i1 to i32
    %c0_i32_0 = arith.constant 0 : i32
    %2 = arith.cmpi ne, %1, %c0_i32_0 : i32
    scf.if %2 {
      %cst_10 = arith.constant 0.000000e+00 : f32
      %12 = vector.broadcast %cst_10 : f32 to vector<16x32xf32>
      %c0_11 = arith.constant 0 : index
      %c0_12 = arith.constant 0 : index
      %13 = vector.load %arg7[%c0_11, %c0_12] : memref<16x32xf32, #tpu.memory_space<vmem>>, vector<16x32xf32>
      tpu.vector_store %arg7[%c0_11, %c0_12], %12 {strides = array<i32>} : memref<16x32xf32, #tpu.memory_space<vmem>>, vector<16x32xf32>,
    } else {
    }
    %c0 = arith.constant 0 : index
    %c0_1 = arith.constant 0 : index
    %3 = vector.load %arg7[%c0, %c0_1] : memref<16x32xf32, #tpu.memory_space<vmem>>, vector<16x32xf32>
    %c0_2 = arith.constant 0 : index
    %c0_3 = arith.constant 0 : index
    %4 = vector.load %arg3[%c0_2, %c0_3] : memref<16x32xf32, #tpu.memory_space<vmem>>, vector<16x32xf32>
    %c0_4 = arith.constant 0 : index
    %c0_5 = arith.constant 0 : index
    %5 = vector.load %arg4[%c0_4, %c0_5] : memref<32x32xf32, #tpu.memory_space<vmem>>, vector<32x32xf32>
    %cst = arith.constant dense<0.000000e+00> : vector<16x32xf32>
    %6 = tpu.matmul %4, %5, %cst {dimension_numbers = #tpu.dot_dimension_numbers<[1], [1], [0], [0], [0, 0, 1, 0], [], []>} : vector<16x32xf32>, vector<32x32xf32>, vector<16x32xf32> -> vector<16x32xf32>
    %7 = arith.addf %3, %6 : vector<16x32xf32>
    %c0_6 = arith.constant 0 : index
    %c0_7 = arith.constant 0 : index
    %8 = vector.load %arg7[%c0_6, %c0_7] : memref<16x32xf32, #tpu.memory_space<vmem>>, vector<16x32xf32>
    tpu.vector_store %arg7[%c0_6, %c0_7], %7 {strides = array<i32>} : memref<16x32xf32, #tpu.memory_space<vmem>>, vector<16x32xf32>,
    %c0_i32_8 = arith.constant 0 : i32
    %9 = arith.cmpi eq, %arg2, %c0_i32_8 : i32
    %10 = arith.extui %9 : i1 to i32
    %c0_i32_9 = arith.constant 0 : i32
    %11 = arith.cmpi ne, %10, %c0_i32_9 : i32
    scf.if %11 {
      %c0_10 = arith.constant 0 : index
      %c0_11 = arith.constant 0 : index
      %12 = vector.load %arg7[%c0_10, %c0_11] : memref<16x32xf32, #tpu.memory_space<vmem>>, vector<16x32xf32>
      %c0_12 = arith.constant 0 : index
      %c0_13 = arith.constant 0 : index
      %13 = vector.load %arg5[%c0_12, %c0_13] : memref<1x32xf32, #tpu.memory_space<vmem>>, vector<1x32xf32>
      %14 = vector.broadcast %13 : vector<1x32xf32> to vector<16x32xf32>
      %15 = arith.addf %12, %14 : vector<16x32xf32>
      %c0_14 = arith.constant 0 : index
      %c0_15 = arith.constant 0 : index
      %16 = vector.load %arg6[%c0_14, %c0_15] : memref<16x32xf32, #tpu.memory_space<vmem>>, vector<16x32xf32>
      tpu.vector_store %arg6[%c0_14, %c0_15], %15 {strides = array<i32>} : memref<16x32xf32, #tpu.memory_space<vmem>>, vector<16x32xf32>,
    } else {
    }
    return
  }
  func.func @transform_0(%arg0: i32, %arg1: i32, %arg2: i32) -> (i32, i32) {
    %c0_i32 = arith.constant 0 : i32
    return %arg0, %arg2 : i32, i32
  }
  func.func @transform_1(%arg0: i32, %arg1: i32, %arg2: i32) -> (i32, i32) {
    %c0_i32 = arith.constant 0 : i32
    return %arg1, %arg2 : i32, i32
  }
  func.func @transform_2(%arg0: i32, %arg1: i32, %arg2: i32) -> (i32, i32) {
    %c0_i32 = arith.constant 0 : i32
    %c0_i32_0 = arith.constant 0 : i32
    return %c0_i32, %arg1 : i32, i32
  }
  func.func @transform_3(%arg0: i32, %arg1: i32, %arg2: i32) -> (i32, i32) {
    %c0_i32 = arith.constant 0 : i32
    return %arg0, %arg1 : i32, i32
  }
}

</mosaic_0001>

<llo_original>
// kernel: tpu_custom_call.1
$region0: #{tpu_custom_call.1}
  #allocation0 [shape = 'u32[]', space=smem, size = 0x4, offset = 0x4, fixed_abs, tag = 'smem constant byte address 0x4 - core index']
  #allocation1 [shape = 'u32[144,128]{1,0:T(1,128)}', space=vmem, size = 0x12000, scoped, tag = 'internal scratch']
  #allocation2 [shape = 'f32[16,32]{1,0:T(8,128)}', space=vmem, size = 0x2000, scoped, tag = 'scratch operand']
  %s0 = inlined_call_operand.hbm [shape: f32[16,32], index: 0, kind: input, shape index: {}]
  %s1 = inlined_call_operand.hbm [shape: f32[32,32], index: 1, kind: input, shape index: {}]
  %s2 = inlined_call_operand.vmem [shape: f32[1,32], index: 2, kind: input, shape index: {}]
  %s3 = inlined_call_operand.hbm [shape: f32[16,32], index: 3, kind: output, shape index: {}]
  %s4 = sld [smem:[#allocation0]]
  $region38: #{tpu_custom_call.1} parent=0
    _
  %s6 = ssub.s32 1, %s4
  %s7 = scalar_select 0, %s6, %s4
  $region1: #{tpu_custom_call.1} parent=0
    #allocation3 [shape = 'u8[8192]{0}', space=vmem, size = 0x2000, scoped, tag = 'input window, operand 0, single buffered']
    #allocation4 [shape = 's32[1]{0}', space=sflag, size = 0x4, scoped, tag = 'scoped memory for tpu_custom_call.1']
    #allocation5 [shape = 's32[1]{0}', space=sflag, size = 0x4, scoped, tag = 'scoped memory for tpu_custom_call.1']
    #allocation6 [shape = 'u8[16384]{0}', space=vmem, size = 0x4000, scoped, tag = 'input window, operand 1, single buffered']
    #allocation7 [shape = 's32[1]{0}', space=sflag, size = 0x4, scoped, tag = 'scoped memory for tpu_custom_call.1']
    #allocation8 [shape = 'u8[8192]{0}', space=vmem, size = 0x2000, scoped, tag = 'output window, operand 0, single buffered']
    %8 = vsyncpa [#allocation4], 0
    %9 = vsyncpa [#allocation7], 0
    %10 = vsyncpa [#allocation5], 0
    // Predicated region
    $region2: #{tpu_custom_call.1} parent=1 // pred_check
      _
    $region3: #{tpu_custom_call.1} parent=1 // pred_check_branch
      %12 = sbr.rel (0) target = $region5
    $region4: #{tpu_custom_call.1} parent=1 // pred_region
      %s14 = ssub.s32 256, 256
      %15 = vsyncadd [#allocation4], %s14
      %s16 = sshll.u32 [#allocation3], 4
      %s17 = int_to_ptr.vmem [resolvable:$true] %s16
      %22 = dma.hbm_to_vmem [thread:$0]  %s0, 256, %s17, [#allocation4], 128, 128, 8
    $region5: #{tpu_custom_call.1} parent=1 // pred_fallthru
      _
    // Predicated region
    $region6: #{tpu_custom_call.1} parent=1 // pred_check
      _
    $region7: #{tpu_custom_call.1} parent=1 // pred_check_branch
      %24 = sbr.rel (0) target = $region9
    $region8: #{tpu_custom_call.1} parent=1 // pred_region
      %s26 = ssub.s32 512, 512
      %27 = vsyncadd [#allocation7], %s26
      %s28 = sshll.u32 [#allocation6], 4
      %s29 = int_to_ptr.vmem [resolvable:$true] %s28
      %34 = dma.hbm_to_vmem [thread:$0]  %s1, 512, %s29, [#allocation7], 128, 128, 8
    $region9: #{tpu_custom_call.1} parent=1 // pred_fallthru
      _
    // Predicated region
    $region10: #{tpu_custom_call.1} parent=1 // pred_check
      _
    $region11: #{tpu_custom_call.1} parent=1 // pred_check_branch
      %36 = sbr.rel (0) target = $region13
    $region12: #{tpu_custom_call.1} parent=1 // pred_region
      _
    $region13: #{tpu_custom_call.1} parent=1 // pred_fallthru
      _
    // Predicated region
    $region14: #{tpu_custom_call.1} parent=1 // pred_check
      _
    $region15: #{tpu_custom_call.1} parent=1 // pred_check_branch
      %38 = sbr.rel (0) target = $region17
    $region16: #{tpu_custom_call.1} parent=1 // pred_region
      %39 = dma.done [#allocation4], 256
    $region17: #{tpu_custom_call.1} parent=1 // pred_fallthru
      _
    // Predicated region
    $region18: #{tpu_custom_call.1} parent=1 // pred_check
      _
    $region19: #{tpu_custom_call.1} parent=1 // pred_check_branch
      %41 = sbr.rel (0) target = $region21
    $region20: #{tpu_custom_call.1} parent=1 // pred_region
      %42 = dma.done [#allocation7], 512
    $region21: #{tpu_custom_call.1} parent=1 // pred_fallthru
      _
    %p43 = scmp.eq.s32.totalorder 0, 0
    // Predicated region
    $region22: #{tpu_custom_call.1} parent=1 // pred_check
      %p44 = pneg %p43
    $region23: #{tpu_custom_call.1} parent=1 // pred_check_branch
      %46 = sbr.rel (%p44) target = $region25
    $region24: #{tpu_custom_call.1} parent=1 // pred_region
      %vm47 = vcmask 261120
      %48 = vst.msk [vmem:[#allocation2] sm:$0xff] %vm47, 0.0
      %49 = vst.msk [vmem:[#allocation2 + $0x8] sm:$0xff] %vm47, 0.0
    $region25: #{tpu_custom_call.1} parent=1 // pred_fallthru
      _
    %v50 = vld [vmem:[#allocation2] sm:$0xff]
    %v51 = vld [vmem:[#allocation2 + $0x8] sm:$0xff]
    %v52 = vld [vmem:[#allocation3] sm:$0xff]
    %v53 = vld [vmem:[#allocation3 + $0x8] sm:$0xff]
    %v54 = vld [vmem:[#allocation6] sm:$0xff]
    %v55 = vld [vmem:[#allocation6 + $0x8] sm:$0xff]
    %v56 = vld [vmem:[#allocation6 + $0x10] sm:$0xff]
    %v57 = vld [vmem:[#allocation6 + $0x18] sm:$0xff]
    %vm58 = vcmask 261120
    %v60 = vsel %vm58, %v52, 0
    %v63 = vsel %vm58, %v53, 0
    %v66 = vsel %vm58, %v54, 0
    %v69 = vsel %vm58, %v55, 0
    %v72 = vsel %vm58, %v56, 0
    %v75 = vsel %vm58, %v57, 0
    %77 = vmatprep.subr.mxu0 0.0
    %78 = vmatpush1.xpose.msra.mxu0 %v66
    %79 = vmatprep.subr.mxu0 0.0
    %80 = vmatpush1.xpose.msra.mxu0 %v69
    %81 = vmatprep.subr.mxu0 0.0
    %82 = vmatpush1.xpose.msra.mxu0 %v72
    %83 = vmatprep.subr.mxu0 0.0
    %84 = vmatpush1.xpose.msra.mxu0 %v75
    %85 = vmatprep.subr.mxu0 0.0
    %86 = vmatpush1.xpose.msra.mxu0 0.0
    %87 = vmatprep.subr.mxu0 0.0
    %88 = vmatpush1.xpose.msra.mxu0 0.0
    %89 = vmatprep.subr.mxu0 0.0
    %90 = vmatpush1.xpose.msra.mxu0 0.0
    %91 = vmatprep.subr.mxu0 0.0
    %92 = vmatpush1.xpose.msra.mxu0 0.0
    %93 = vmatprep.subr.mxu0 0.0
    %94 = vmatpush1.xpose.msra.mxu0 0.0
    %95 = vmatprep.subr.mxu0 0.0
    %96 = vmatpush1.xpose.msra.mxu0 0.0
    %97 = vmatprep.subr.mxu0 0.0
    %98 = vmatpush1.xpose.msra.mxu0 0.0
    %99 = vmatprep.subr.mxu0 0.0
    %100 = vmatpush1.xpose.msra.mxu0 0.0
    %101 = vmatprep.subr.mxu0 0.0
    %102 = vmatpush1.xpose.msra.mxu0 0.0
    %103 = vmatprep.subr.mxu0 0.0
    %104 = vmatpush1.xpose.msra.mxu0 0.0
    %105 = vmatprep.subr.mxu0 0.0
    %106 = vmatpush1.xpose.msra.mxu0 0.0
    %107 = vmatprep.subr.mxu0 0.0
    %108 = vmatpush1.xpose.msra.mxu0 0.0
    %109 = vmatprep.subr.mxu0 0.0
    %110 = vmatpush1.xpose.msra.mxu0 0.0
    %111 = vmatprep.subr.mxu0 0.0
    %112 = vmatpush1.xpose.msra.mxu0 0.0
    %113 = vmatprep.subr.mxu0 0.0
    %114 = vmatpush1.xpose.msra.mxu0 0.0
    %115 = vmatprep.subr.mxu0 0.0
    %116 = vmatpush1.xpose.msra.mxu0 0.0
    %117 = vmatprep.subr.mxu0 0.0
    %118 = vmatpush1.xpose.msra.mxu0 0.0
    %119 = vmatprep.subr.mxu0 0.0
    %120 = vmatpush1.xpose.msra.mxu0 0.0
    %121 = vmatprep.subr.mxu0 0.0
    %122 = vmatpush1.xpose.msra.mxu0 0.0
    %123 = vmatprep.subr.mxu0 0.0
    %124 = vmatpush1.xpose.msra.mxu0 0.0
    %125 = vmatprep.subr.mxu0 0.0
    %126 = vmatpush1.xpose.msra.mxu0 0.0
    %127 = vmatprep.subr.mxu0 0.0
    %128 = vmatpush1.xpose.msra.mxu0 0.0
    %129 = vmatprep.subr.mxu0 0.0
    %130 = vmatpush1.xpose.msra.mxu0 0.0
    %131 = vmatprep.subr.mxu0 0.0
    %132 = vmatpush1.xpose.msra.mxu0 0.0
    %133 = vmatprep.subr.mxu0 0.0
    %134 = vmatpush1.xpose.msra.mxu0 0.0
    %135 = vmatprep.subr.mxu0 0.0
    %136 = vmatpush1.xpose.msra.mxu0 0.0
    %137 = vmatprep.subr.mxu0 0.0
    %138 = vmatpush1.xpose.msra.mxu0 0.0
    %139 = vmatprep.subr.mxu0 0.0
    %140 = vmatpush1.xpose.msra.mxu0 0.0
    %141 = vmatprep.mubr.f32.mxu0 0.0
    %142 = vmatmul.mubr.f32.gmra.mrb[0].mxu0 %v60
    %v143 = vpop.f32.mrb[0].mxu0
    %v144 = vadd.f32 0.0, %v143
    %v145 = vpop.f32.mrb[0].mxu0
    %146 = vmatprep.mubr.f32.mxu0 0.0
    %147 = vmatmul.mubr.f32.gmra.mrb[0].mxu0 %v63
    %v148 = vpop.f32.mrb[0].mxu0
    %v149 = vadd.f32 0.0, %v148
    %v150 = vpop.f32.mrb[0].mxu0
    %151 = vdwg.mxu0
    %v152 = vadd.f32 %v50, %v144
    %v153 = vadd.f32 %v51, %v149
    %154 = vst.msk [vmem:[#allocation2] sm:$0xff] %vm58, %v152
    %155 = vst.msk [vmem:[#allocation2 + $0x8] sm:$0xff] %vm58, %v153
    // Predicated region
    $region26: #{tpu_custom_call.1} parent=1 // pred_check
      %p156 = pneg %p43
    $region27: #{tpu_custom_call.1} parent=1 // pred_check_branch
      %158 = sbr.rel (%p156) target = $region29
    $region28: #{tpu_custom_call.1} parent=1 // pred_region
      %v159 = vld [vmem:[#allocation2] sm:$0xff]
      %v160 = vld [vmem:[#allocation2 + $0x8] sm:$0xff]
      %v161 = vld [vmem:[%s2] sm:$0x1]
      %v163 = vlaneseq
      %v164 = vshrl.u32 %v163, 7
      %v165 = vsub.s32 0, %v164
      %v166 = vrot.slane %v161, %v165
      %v168 = vadd.f32 %v159, %v166
      %v169 = vadd.f32 %v160, %v166
      %170 = vst.msk [vmem:[#allocation8] sm:$0xff] %vm58, %v168
      %171 = vst.msk [vmem:[#allocation8 + $0x8] sm:$0xff] %vm58, %v169
    $region29: #{tpu_custom_call.1} parent=1 // pred_fallthru
      _
    // Predicated region
    $region30: #{tpu_custom_call.1} parent=1 // pred_check
      _
    $region31: #{tpu_custom_call.1} parent=1 // pred_check_branch
      %173 = sbr.rel (0) target = $region33
    $region32: #{tpu_custom_call.1} parent=1 // pred_region
      %s175 = ssub.s32 256, 256
      %176 = vsyncadd [#allocation5], %s175
      %s177 = sshll.u32 [#allocation8], 4
      %s178 = int_to_ptr.vmem [resolvable:$true] %s177
      %183 = dma.vmem_to_hbm [thread:$0]  %s178, 256, %s3, [#allocation5], 128, 128, 8
    $region33: #{tpu_custom_call.1} parent=1 // pred_fallthru
      _
    // Predicated region
    $region34: #{tpu_custom_call.1} parent=1 // pred_check
      _
    $region35: #{tpu_custom_call.1} parent=1 // pred_check_branch
      %185 = sbr.rel (0) target = $region37
    $region36: #{tpu_custom_call.1} parent=1 // pred_region
      %186 = dma.done [#allocation5], 256
    $region37: #{tpu_custom_call.1} parent=1 // pred_fallthru
      _
    %187 = vsyncpa [#allocation4], 1
    %188 = vsyncpa [#allocation7], 1
    %189 = vsyncpa [#allocation5], 1

</llo_original>
